<compile_context>
chip_gen: v5e
topology: v5e:2x2
jax: 0.10.0
libtpu: 0.0.40
codegen_flags: <defaults>
</compile_context>

<pallas_src>
import functools

import jax
import jax.numpy as jnp
from jax.experimental import pallas as pl
from jax.experimental.pallas import tpu as pltpu

EPS = 1e-5
ACC_ITEMSIZE = 4                       # kernels accumulate in f32 regardless of input dtype
TILE_BYTES_TARGET = 4 * 1024 * 1024    # ~4 MiB x-tile (f32); dbl-buffered in+out well under VMEM
VMEM_LIMIT_BYTES = 48 * 1024 * 1024    # headroom below v7x's 64 MiB physical VMEM
MIN_GRID_STEPS = 8                     # >= 4 pipelined steps per TC on v7x's two TensorCores


# ---------------------------------------------------------------------------
# Kernels
# ---------------------------------------------------------------------------

def _gbn_fused_kernel(x_ref, gamma_ref, beta_ref, o_ref):
    """Whole virtual batches fit in one block: (G, chunk, D)."""
    x = x_ref[...].astype(jnp.float32)                           # (G, chunk, D)
    mean = jnp.mean(x, axis=1, keepdims=True)                    # (G, 1, D)
    var = jnp.mean(jnp.square(x - mean), axis=1, keepdims=True)  # biased, two-pass
    scale = jax.lax.rsqrt(var + EPS) * gamma_ref[...]            # gamma folded into scale
    shift = beta_ref[...] - mean * scale                         # mean folded into bias
    o_ref[...] = (x * scale + shift).astype(o_ref.dtype)         # single FMA streamed out


def _gbn_stats_kernel(x_ref, mean_ref, var_ref, sum_sc, sq_sc, *, chunk):
    """Streaming per-chunk stats: grid axis 1 walks row tiles of one chunk."""
    r = pl.program_id(1)

    @pl.when(r == 0)
    def _():
        sum_sc[...] = jnp.zeros_like(sum_sc)
        sq_sc[...] = jnp.zeros_like(sq_sc)

    x = x_ref[...].astype(jnp.float32)                           # (1, rt, D)
    sum_sc[...] += jnp.sum(x, axis=1, keepdims=True)
    sq_sc[...] += jnp.sum(x * x, axis=1, keepdims=True)

    @pl.when(r == pl.num_programs(1) - 1)
    def _():
        inv_n = jnp.float32(1.0 / chunk)
        mean = sum_sc[...] * inv_n
        # One-pass variance (f32 accumulation); clamp tiny negatives.
        var = jnp.maximum(sq_sc[...] * inv_n - mean * mean, 0.0)
        mean_ref[...] = mean
        var_ref[...] = var


def _gbn_apply_kernel(x_ref, mean_ref, var_ref, gamma_ref, beta_ref, o_ref):
    x = x_ref[...].astype(jnp.float32)                           # (1, rt, D)
    scale = jax.lax.rsqrt(var_ref[...] + EPS) * gamma_ref[...]
    shift = beta_ref[...] - mean_ref[...] * scale
    o_ref[...] = (x * scale + shift).astype(o_ref.dtype)


# ---------------------------------------------------------------------------
# Tiling heuristics
# ---------------------------------------------------------------------------

def _pick_group_size(n_chunks, chunk, D):
    """Pick G = virtual batches per grid step. Prefer enough grid steps for
    pipelining on both v7x TensorCores, then a balanced (even) step count,
    then the largest tile that fits the byte budget (f32-accounted)."""
    target_steps = min(n_chunks, MIN_GRID_STEPS)
    best_g, best_key = 1, None
    for g in range(1, n_chunks + 1):
        if n_chunks % g:
            continue
        if g * chunk * D * ACC_ITEMSIZE > TILE_BYTES_TARGET:
            continue
        n_groups = n_chunks // g
        meets_steps = n_groups >= target_steps
        balanced = (n_groups % 2 == 0) or (n_groups == 1)
        key = (meets_steps, balanced, g)
        if best_key is None or key > best_key:
            best_key, best_g = key, g
    return best_g


def _pick_row_tile(chunk, D):
    """Row tile for the streaming path: divides chunk, multiple of 8 (sublane
    rule for non-full blocks), fits the byte budget; prefer >= 4 row tiles."""
    best, best_key = None, None
    for rt in range(8, chunk + 1, 8):
        if chunk % rt:
            continue
        if rt * D * ACC_ITEMSIZE > TILE_BYTES_TARGET:
            continue
        key = (chunk // rt >= 4, rt)
        if best_key is None or key > best_key:
            best_key, best = key, rt
    return best


# ---------------------------------------------------------------------------
# pallas_call wrappers
# ---------------------------------------------------------------------------

def _gbn_fused(x3, gamma3, beta3, n_chunks, chunk, D, itemsize):
    G = _pick_group_size(n_chunks, chunk, D)
    n_groups = n_chunks // G
    B = n_chunks * chunk

    cost = pl.CostEstimate(
        flops=7 * B * D,
        transcendentals=n_chunks * D,
        bytes_accessed=(2 * B * D + 2 * D) * itemsize,
    )
    return pl.pallas_call(
        _gbn_fused_kernel,
        out_shape=jax.ShapeDtypeStruct((n_chunks, chunk, D), x3.dtype),
        grid_spec=pltpu.PrefetchScalarGridSpec(
            num_scalar_prefetch=0,
            grid=(n_groups,),
            in_specs=[
                pl.BlockSpec((G, chunk, D), lambda i: (i, 0, 0)),
                pl.BlockSpec((1, 1, D), lambda i: (0, 0, 0)),
                pl.BlockSpec((1, 1, D), lambda i: (0, 0, 0)),
            ],
            out_specs=pl.BlockSpec((G, chunk, D), lambda i: (i, 0, 0)),
        ),
        compiler_params=pltpu.CompilerParams(
            dimension_semantics=("parallel",),
            vmem_limit_bytes=VMEM_LIMIT_BYTES,
        ),
        cost_estimate=cost,
    )(x3, gamma3, beta3)


def _gbn_streaming(x3, gamma3, beta3, n_chunks, chunk, D, itemsize):
    """Fallback when a single chunk exceeds the tile budget: two-pass
    (stats kernel, then apply kernel), row-tiled within each chunk."""
    rt = _pick_row_tile(chunk, D)
    if rt is None:
        # TODO(synk): chunk not cleanly row-tileable (chunk % 8 != 0 at large
        # sizes); fall back to a single oversized block.
        rt = chunk
    n_rt = chunk // rt
    B = n_chunks * chunk

    stats_cost = pl.CostEstimate(
        flops=4 * B * D,
        transcendentals=0,
        bytes_accessed=B * D * itemsize + 2 * n_chunks * D * 4,
    )
    mean, var = pl.pallas_call(
        functools.partial(_gbn_stats_kernel, chunk=chunk),
        out_shape=(
            jax.ShapeDtypeStruct((n_chunks, 1, D), jnp.float32),
            jax.ShapeDtypeStruct((n_chunks, 1, D), jnp.float32),
        ),
        grid_spec=pltpu.PrefetchScalarGridSpec(
            num_scalar_prefetch=0,
            grid=(n_chunks, n_rt),
            in_specs=[pl.BlockSpec((1, rt, D), lambda c, r: (c, r, 0))],
            out_specs=(
                pl.BlockSpec((1, 1, D), lambda c, r: (c, 0, 0)),
                pl.BlockSpec((1, 1, D), lambda c, r: (c, 0, 0)),
            ),
            scratch_shapes=[
                pltpu.VMEM((1, 1, D), jnp.float32),
                pltpu.VMEM((1, 1, D), jnp.float32),
            ],
        ),
        compiler_params=pltpu.CompilerParams(
            dimension_semantics=("parallel", "arbitrary"),
            vmem_limit_bytes=VMEM_LIMIT_BYTES,
        ),
        cost_estimate=stats_cost,
    )(x3)

    apply_cost = pl.CostEstimate(
        flops=2 * B * D + 4 * n_chunks * D,
        transcendentals=n_chunks * D,
        bytes_accessed=2 * B * D * itemsize + (2 * n_chunks * D + 2 * D) * 4,
    )
    return pl.pallas_call(
        _gbn_apply_kernel,
        out_shape=jax.ShapeDtypeStruct((n_chunks, chunk, D), x3.dtype),
        grid_spec=pltpu.PrefetchScalarGridSpec(
            num_scalar_prefetch=0,
            grid=(n_chunks, n_rt),
            in_specs=[
                pl.BlockSpec((1, rt, D), lambda c, r: (c, r, 0)),
                pl.BlockSpec((1, 1, D), lambda c, r: (c, 0, 0)),
                pl.BlockSpec((1, 1, D), lambda c, r: (c, 0, 0)),
                pl.BlockSpec((1, 1, D), lambda c, r: (0, 0, 0)),
                pl.BlockSpec((1, 1, D), lambda c, r: (0, 0, 0)),
            ],
            out_specs=pl.BlockSpec((1, rt, D), lambda c, r: (c, r, 0)),
        ),
        compiler_params=pltpu.CompilerParams(
            dimension_semantics=("parallel", "parallel"),
            vmem_limit_bytes=VMEM_LIMIT_BYTES,
        ),
        cost_estimate=apply_cost,
    )(x3, mean, var, gamma3, beta3)


def gbn_forward(x, gamma, beta, virtual_batch_size):
    """Ghost Batch Norm forward. x: (B, D)."""
    B, D = x.shape
    # torch.chunk(n, 0) with n = ceil(B / vbs) gives chunks of size ceil(B / n).
    n_chunks = -(-B // virtual_batch_size)
    chunk = -(-B // n_chunks)
    # TODO(synk): ragged last chunk (B % chunk != 0) unsupported; would need
    # masked statistics for the tail tile (PyTorch handles it).
    assert B % chunk == 0, "example restricted to evenly divisible chunks"
    n_chunks = B // chunk

    itemsize = jnp.dtype(x.dtype).itemsize
    x3 = x.reshape(n_chunks, chunk, D)            # free: row-major contiguous
    gamma3 = gamma.reshape(1, 1, D)
    beta3 = beta.reshape(1, 1, D)

    if chunk * D * ACC_ITEMSIZE <= TILE_BYTES_TARGET:
        out3 = _gbn_fused(x3, gamma3, beta3, n_chunks, chunk, D, itemsize)
    else:
        out3 = _gbn_streaming(x3, gamma3, beta3, n_chunks, chunk, D, itemsize)
    return out3.reshape(B, D)


# ---------------------------------------------------------------------------
# Pure-JAX reference (mirrors the PyTorch module)
# ---------------------------------------------------------------------------

def gbn_reference(x, gamma, beta, virtual_batch_size):
    B, D = x.shape
    n_chunks = -(-B // virtual_batch_size)
    chunk = -(-B // n_chunks)
    outs = []
    for i in range(0, B, chunk):
        xc = x[i:i + chunk]
        mean = jnp.mean(xc, axis=0, keepdims=True)
        var = jnp.mean((xc - mean) ** 2, axis=0, keepdims=True)  # biased
        outs.append((xc - mean) / jnp.sqrt(var + EPS) * gamma + beta)
    return jnp.concatenate(outs, axis=0)


if __name__ == "__main__":
    key = jax.random.PRNGKey(0)
    k_x, k_g, k_b = jax.random.split(key, 3)

    # Small demo shapes consistent with the module.
    batch = 16
    input_dim = 32
    virtual_batch_size = 8

    x = jax.random.normal(k_x, (batch, input_dim), dtype=jnp.float32)
    gamma = 1.0 + 0.1 * jax.random.normal(k_g, (input_dim,), dtype=jnp.float32)
    beta = 0.1 * jax.random.normal(k_b, (input_dim,), dtype=jnp.float32)

    out = jax.block_until_ready(gbn_forward(x, gamma, beta, virtual_batch_size))
    ref = gbn_reference(x, gamma, beta, virtual_batch_size)
    assert out.shape == (batch, input_dim)
    assert jnp.allclose(out, ref, atol=1e-5, rtol=1e-5), "mismatch vs reference (small)"

    # Production-like shape exercising the multi-chunk fused path (grid >= 8).
    B2, D2, vbs2 = 4096, 128, 256
    x2 = jax.random.normal(k_x, (B2, D2), dtype=jnp.float32)
    g2 = 1.0 + 0.1 * jax.random.normal(k_g, (D2,), dtype=jnp.float32)
    b2 = 0.1 * jax.random.normal(k_b, (D2,), dtype=jnp.float32)
    out2 = jax.block_until_ready(gbn_forward(x2, g2, b2, vbs2))
    ref2 = gbn_reference(x2, g2, b2, vbs2)
    assert jnp.allclose(out2, ref2, atol=1e-4, rtol=1e-4), "mismatch (fused, large)"

    # Oversized single-chunk shape exercising the streaming two-pass fallback.
    B3, D3, vbs3 = 4096, 512, 4096
    x3 = jax.random.normal(k_x, (B3, D3), dtype=jnp.float32)
    g3 = 1.0 + 0.1 * jax.random.normal(k_g, (D3,), dtype=jnp.float32)
    b3 = 0.1 * jax.random.normal(k_b, (D3,), dtype=jnp.float32)
    out3 = jax.block_until_ready(gbn_forward(x3, g3, b3, vbs3))
    ref3 = gbn_reference(x3, g3, b3, vbs3)
    assert jnp.allclose(out3, ref3, atol=1e-4, rtol=1e-4), "mismatch (streaming)"

    print("KERNEL_OK")
</pallas_src>

<mosaic_0001>
module attributes {stable_mosaic.version = 11 : i64} {
  func.func @_gbn_fused_kernel(%arg0: i32, %arg1: memref<1x8x32xf32, #tpu.memory_space<vmem>>, %arg2: memref<1x1x32xf32, #tpu.memory_space<vmem>>, %arg3: memref<1x1x32xf32, #tpu.memory_space<vmem>>, %arg4: memref<1x8x32xf32, #tpu.memory_space<vmem>>) attributes {dimension_semantics = [#tpu.dimension_semantics<parallel>], iteration_bounds = array<i64: 2>, scalar_prefetch = 0 : i64, scratch_operands = 0 : i64, tpu.core_type = #tpu.core_type<tc>, window_params = [{transform_indices = @transform_0, window_bounds = array<i64: 1, 8, 32>}, {pipeline_mode = #tpu.pipeline_mode<synchronous>, transform_indices = @transform_1, window_bounds = array<i64: 1, 1, 32>}, {pipeline_mode = #tpu.pipeline_mode<synchronous>, transform_indices = @transform_2, window_bounds = array<i64: 1, 1, 32>}, {transform_indices = @transform_3, window_bounds = array<i64: 1, 8, 32>}]} {
    %c0 = arith.constant 0 : index
    %c0_0 = arith.constant 0 : index
    %c0_1 = arith.constant 0 : index
    %0 = vector.load %arg1[%c0, %c0_0, %c0_1] : memref<1x8x32xf32, #tpu.memory_space<vmem>>, vector<1x8x32xf32>
    %cst = arith.constant dense<0.000000e+00> : vector<1x32xf32>
    %1 = vector.multi_reduction <add>, %0, %cst [1] : vector<1x8x32xf32> to vector<1x32xf32>
    %2 = vector.shape_cast %1 : vector<1x32xf32> to vector<1x1x32xf32>
    %cst_2 = arith.constant 8.000000e+00 : f32
    %3 = vector.broadcast %cst_2 : f32 to vector<1x1x32xf32>
    %4 = arith.divf %2, %3 : vector<1x1x32xf32>
    %5 = vector.broadcast %4 : vector<1x1x32xf32> to vector<1x8x32xf32>
    %6 = arith.subf %0, %5 : vector<1x8x32xf32>
    %7 = arith.mulf %6, %6 : vector<1x8x32xf32>
    %cst_3 = arith.constant dense<0.000000e+00> : vector<1x32xf32>
    %8 = vector.multi_reduction <add>, %7, %cst_3 [1] : vector<1x8x32xf32> to vector<1x32xf32>
    %9 = vector.shape_cast %8 : vector<1x32xf32> to vector<1x1x32xf32>
    %cst_4 = arith.constant 8.000000e+00 : f32
    %10 = vector.broadcast %cst_4 : f32 to vector<1x1x32xf32>
    %11 = arith.divf %9, %10 : vector<1x1x32xf32>
    %cst_5 = arith.constant 9.99999974E-6 : f32
    %12 = vector.broadcast %cst_5 : f32 to vector<1x1x32xf32>
    %13 = arith.addf %11, %12 : vector<1x1x32xf32>
    %14 = math.rsqrt %13 : vector<1x1x32xf32>
    %c0_6 = arith.constant 0 : index
    %c0_7 = arith.constant 0 : index
    %c0_8 = arith.constant 0 : index
    %15 = vector.load %arg2[%c0_6, %c0_7, %c0_8] : memref<1x1x32xf32, #tpu.memory_space<vmem>>, vector<1x1x32xf32>
    %16 = arith.mulf %14, %15 : vector<1x1x32xf32>
    %c0_9 = arith.constant 0 : index
    %c0_10 = arith.constant 0 : index
    %c0_11 = arith.constant 0 : index
    %17 = vector.load %arg3[%c0_9, %c0_10, %c0_11] : memref<1x1x32xf32, #tpu.memory_space<vmem>>, vector<1x1x32xf32>
    %18 = arith.mulf %4, %16 : vector<1x1x32xf32>
    %19 = arith.subf %17, %18 : vector<1x1x32xf32>
    %20 = vector.broadcast %16 : vector<1x1x32xf32> to vector<1x8x32xf32>
    %21 = arith.mulf %0, %20 : vector<1x8x32xf32>
    %22 = vector.broadcast %19 : vector<1x1x32xf32> to vector<1x8x32xf32>
    %23 = arith.addf %21, %22 : vector<1x8x32xf32>
    %c0_12 = arith.constant 0 : index
    %c0_13 = arith.constant 0 : index
    %c0_14 = arith.constant 0 : index
    %24 = vector.load %arg4[%c0_12, %c0_13, %c0_14] : memref<1x8x32xf32, #tpu.memory_space<vmem>>, vector<1x8x32xf32>
    tpu.vector_store %arg4[%c0_12, %c0_13, %c0_14], %23 {strides = array<i32>} : memref<1x8x32xf32, #tpu.memory_space<vmem>>, vector<1x8x32xf32>,
    return
  }
  func.func @transform_0(%arg0: i32) -> (i32, i32, i32) {
    %c0_i32 = arith.constant 0 : i32
    %c0_i32_0 = arith.constant 0 : i32
    %c0_i32_1 = arith.constant 0 : i32
    return %arg0, %c0_i32, %c0_i32_0 : i32, i32, i32
  }
  func.func @transform_1(%arg0: i32) -> (i32, i32, i32) {
    %c0_i32 = arith.constant 0 : i32
    %c0_i32_0 = arith.constant 0 : i32
    %c0_i32_1 = arith.constant 0 : i32
    %c0_i32_2 = arith.constant 0 : i32
    return %c0_i32, %c0_i32_0, %c0_i32_1 : i32, i32, i32
  }
  func.func @transform_2(%arg0: i32) -> (i32, i32, i32) {
    %c0_i32 = arith.constant 0 : i32
    %c0_i32_0 = arith.constant 0 : i32
    %c0_i32_1 = arith.constant 0 : i32
    %c0_i32_2 = arith.constant 0 : i32
    return %c0_i32, %c0_i32_0, %c0_i32_1 : i32, i32, i32
  }
  func.func @transform_3(%arg0: i32) -> (i32, i32, i32) {
    %c0_i32 = arith.constant 0 : i32
    %c0_i32_0 = arith.constant 0 : i32
    %c0_i32_1 = arith.constant 0 : i32
    return %arg0, %c0_i32, %c0_i32_0 : i32, i32, i32
  }
}

</mosaic_0001>

<llo_original>
// kernel: tpu_custom_call.1
$region0: #{tpu_custom_call.1}
  #allocation0 [shape = 'u32[]', space=smem, size = 0x4, offset = 0x4, fixed_abs, tag = 'smem constant byte address 0x4 - core index']
  #allocation1 [shape = 'u32[72,128]{1,0:T(1,128)}', space=vmem, size = 0x9000, scoped, tag = 'internal scratch']
  %s0 = inlined_call_operand.hbm [shape: f32[2,8,32], index: 0, kind: input, shape index: {}]
  %s1 = inlined_call_operand.hbm [shape: f32[1,1,32], index: 1, kind: input, shape index: {}]
  %s2 = inlined_call_operand.vmem [shape: f32[1,1,32], index: 2, kind: input, shape index: {}]
  %s3 = inlined_call_operand.hbm [shape: f32[2,8,32], index: 3, kind: output, shape index: {}]
  %s4 = sld [smem:[#allocation0]]
  $region53: #{tpu_custom_call.1} parent=0
    _
  %s6 = ssub.s32 1, %s4
  %s7 = scalar_select 0, %s6, %s4
  $region1: #{tpu_custom_call.1} parent=0
    #allocation2 [shape = 'u8[8192]{0}', space=vmem, size = 0x2000, scoped, tag = 'input window, operand 0']
    #allocation3 [shape = 's32[2]{0}', space=sflag, size = 0x8, scoped, tag = 'scoped memory for tpu_custom_call.1']
    #allocation4 [shape = 's32[2]{0}', space=sflag, size = 0x8, scoped, tag = 'scoped memory for tpu_custom_call.1']
    #allocation5 [shape = 'u8[512]{0}', space=vmem, size = 0x400, scoped, tag = 'input window, operand 1, single buffered']
    #allocation6 [shape = 's32[1]{0}', space=sflag, size = 0x4, scoped, tag = 'scoped memory for tpu_custom_call.1']
    #allocation7 [shape = 'u8[8192]{0}', space=vmem, size = 0x2000, scoped, tag = 'output window, operand 0']
    %8 = vsyncpa [#allocation3], 0
    %s9 = scalar_lea.sflag [#allocation3], 1
    %10 = vsyncpa %s9, 0
    %11 = vsyncpa [#allocation6], 0
    %12 = vsyncpa [#allocation4], 0
    %s13 = scalar_lea.sflag [#allocation4], 1
    %14 = vsyncpa %s13, 0
    loop: start=0, step=1, limit=4
    $region2: #{tpu_custom_call.1} parent=1 // loop_pre_header
      _
    $region3: #{tpu_custom_call.1} parent=1 // loop_header
      %s16 = sphi 0, %s20
      %p17 = scmp.ge.s32.totalorder %s16, 4
      %s26 = sphi 0, %s28
      %s29 = sphi 0, %s26
      %s30 = sphi 0, %s29
      %s46 = sphi 0, %s30
      %s50 = sphi 0, %s50
      %s52 = sphi 0, %s50
      %s53 = sphi 0, %s52
      %s67 = sphi 0, %s53
      %s71 = sphi 0, %s71
      %s73 = sphi 0, %s71
      %s74 = sphi 0, %s73
      %s88 = sphi 0, %s74
      %s94 = sphi 0, %s96
      %s97 = sphi 0, %s94
      %s98 = sphi 0, %s97
      %s114 = sphi 0, %s98
    $region4: #{tpu_custom_call.1} parent=1 // loop_header_branch
      %19 = sbr.rel (%p17) target = $region8
    $region5: #{tpu_custom_call.1} parent=1 // loop_body
      %s21 = ssub.s32 %s16, 1
      %s22 = ssub.s32 %s16, 2
      %s23 = sadd.s32 %s16, 1
      %s24 = ssub.s32 %s16, %s23
      %p25 = scmp.eq.s32.totalorder %s24, 0
      %s27 = sadd.s32 %s26, 1
      %s28 = scalar_select %p25, %s26, %s27
      %p31 = pneg %p25
      %p32 = scmp.eq.s32.totalorder %s16, 1
      %p33 = por %p31, %p32
      %p34 = scmp.ne.s32.totalorder %s26, %s29
      %p35 = scmp.eq.s32.totalorder %s16, 0
      %p36 = por %p34, %p35
      %p37 = scmp.ne.s32.totalorder %s26, %s29
      %p38 = scmp.eq.s32.totalorder %s21, 1
      %p39 = por %p37, %p38
      %p40 = scmp.ne.s32.totalorder %s29, %s30
      %p41 = scmp.eq.s32.totalorder %s21, 0
      %p42 = por %p40, %p41
      %p43 = scmp.ne.s32.totalorder %s29, %s30
      %p44 = scmp.eq.s32.totalorder %s22, 1
      %p45 = por %p43, %p44
      %p47 = scmp.ne.s32.totalorder %s30, %s46
      %p48 = scmp.eq.s32.totalorder %s22, 0
      %p49 = por %p47, %p48
      %s51 = sadd.s32 %s50, 1
      %p54 = scmp.eq.s32.totalorder %s16, 1
      %p55 = scmp.ne.s32.totalorder %s50, %s52
      %p56 = scmp.eq.s32.totalorder %s16, 0
      %p57 = por %p55, %p56
      %p58 = scmp.ne.s32.totalorder %s50, %s52
      %p59 = scmp.eq.s32.totalorder %s21, 1
      %p60 = por %p58, %p59
      %p61 = scmp.ne.s32.totalorder %s52, %s53
      %p62 = scmp.eq.s32.totalorder %s21, 0
      %p63 = por %p61, %p62
      %p64 = scmp.ne.s32.totalorder %s52, %s53
      %p65 = scmp.eq.s32.totalorder %s22, 1
      %p66 = por %p64, %p65
      %p68 = scmp.ne.s32.totalorder %s53, %s67
      %p69 = scmp.eq.s32.totalorder %s22, 0
      %p70 = por %p68, %p69
      %s72 = sadd.s32 %s71, 1
      %p75 = scmp.eq.s32.totalorder %s16, 1
      %p76 = scmp.ne.s32.totalorder %s71, %s73
      %p77 = scmp.eq.s32.totalorder %s16, 0
      %p78 = por %p76, %p77
      %p79 = scmp.ne.s32.totalorder %s71, %s73
      %p80 = scmp.eq.s32.totalorder %s21, 1
      %p81 = por %p79, %p80
      %p82 = scmp.ne.s32.totalorder %s73, %s74
      %p83 = scmp.eq.s32.totalorder %s21, 0
      %p84 = por %p82, %p83
      %p85 = scmp.ne.s32.totalorder %s73, %s74
      %p86 = scmp.eq.s32.totalorder %s22, 1
      %p87 = por %p85, %p86
      %p89 = scmp.ne.s32.totalorder %s74, %s88
      %p90 = scmp.eq.s32.totalorder %s22, 0
      %p91 = por %p89, %p90
      %s92 = ssub.s32 %s16, %s23
      %p93 = scmp.eq.s32.totalorder %s92, 0
      %s95 = sadd.s32 %s94, 1
      %s96 = scalar_select %p93, %s94, %s95
      %p99 = pneg %p93
      %p100 = scmp.eq.s32.totalorder %s16, 1
      %p101 = por %p99, %p100
      %p102 = scmp.ne.s32.totalorder %s94, %s97
      %p103 = scmp.eq.s32.totalorder %s16, 0
      %p104 = por %p102, %p103
      %p105 = scmp.ne.s32.totalorder %s94, %s97
      %p106 = scmp.eq.s32.totalorder %s21, 1
      %p107 = por %p105, %p106
      %p108 = scmp.ne.s32.totalorder %s97, %s98
      %p109 = scmp.eq.s32.totalorder %s21, 0
      %p110 = por %p108, %p109
      %p111 = scmp.ne.s32.totalorder %s97, %s98
      %p112 = scmp.eq.s32.totalorder %s22, 1
      %p113 = por %p111, %p112
      %p115 = scmp.ne.s32.totalorder %s98, %s114
      %p116 = scmp.eq.s32.totalorder %s22, 0
      %p117 = por %p115, %p116
      %p118 = scmp.le.s32.totalorder 1, %s16
      %p119 = scmp.lt.s32.totalorder %s16, 3
      %p120 = pnand %p118, %p119
      %p121 = pneg %p120
      // Predicated region
      $region9: #{tpu_custom_call.1} parent=5 // pred_check
        _
      $region10: #{tpu_custom_call.1} parent=5 // pred_check_branch
        %123 = sbr.rel (%p120) target = $region12
      $region11: #{tpu_custom_call.1} parent=5 // pred_region
        %s124 = ssub.s32 %s16, 1
        // Predicated region
        $region13: #{tpu_custom_call.1} parent=11 // pred_check
          %p125 = pneg %p63
        $region14: #{tpu_custom_call.1} parent=11 // pred_check_branch
          %127 = sbr.rel (%p125) target = $region16
        $region15: #{tpu_custom_call.1} parent=11 // pred_region
          %129 = vsyncadd [#allocation6], 0
          %s131 = sshll.u32 %s1, 4
          %s132 = int_to_ptr.hbm [resolvable:$true] %s131
          %s133 = sshll.u32 [#allocation5], 4
          %s134 = int_to_ptr.vmem [resolvable:$true] %s133
          %136 = dma.hbm_to_vmem [thread:$0]  %s132, 16, %s134, [#allocation6]
        $region16: #{tpu_custom_call.1} parent=11 // pred_fallthru
          _
        // Predicated region
        $region17: #{tpu_custom_call.1} parent=11 // pred_check
          %p137 = pneg %p84
        $region18: #{tpu_custom_call.1} parent=11 // pred_check_branch
          %139 = sbr.rel (%p137) target = $region20
        $region19: #{tpu_custom_call.1} parent=11 // pred_region
          _
        $region20: #{tpu_custom_call.1} parent=11 // pred_fallthru
          _
      $region12: #{tpu_custom_call.1} parent=5 // pred_fallthru
        _
      %p140 = scmp.lt.s32.totalorder %s16, 2
      // Predicated region
      $region21: #{tpu_custom_call.1} parent=5 // pred_check
        %p141 = pneg %p140
      $region22: #{tpu_custom_call.1} parent=5 // pred_check_branch
        %143 = sbr.rel (%p141) target = $region24
      $region23: #{tpu_custom_call.1} parent=5 // pred_region
        // Predicated region
        $region25: #{tpu_custom_call.1} parent=23 // pred_check
          %p144 = pneg %p36
        $region26: #{tpu_custom_call.1} parent=23 // pred_check_branch
          %146 = sbr.rel (%p144) target = $region28
        $region27: #{tpu_custom_call.1} parent=23 // pred_region
          %s147 = sand.u32 %s26, 1
          %s148 = scalar_lea.sflag [#allocation3], %s147
          %s149 = sand.u32 %s26, 1
          %s150 = smul.addr %s149, 8
          %s151 = scalar_lea.vmem [#allocation2], %s150
          %153 = vsyncadd %s148, 0
          %s154 = smul.addr %s16, 8
          %s155 = scalar_lea.hbm %s0, %s154
          %s157 = sshll.u32 %s155, 4
          %s158 = int_to_ptr.hbm [resolvable:$true] %s157
          %s159 = sshll.u32 %s151, 4
          %s160 = int_to_ptr.vmem [resolvable:$true] %s159
          %162 = dma.hbm_to_vmem [thread:$0]  %s158, 128, %s160, %s148
        $region28: #{tpu_custom_call.1} parent=23 // pred_fallthru
          _
      $region24: #{tpu_custom_call.1} parent=5 // pred_fallthru
        _
      %p163 = scmp.le.s32.totalorder 1, %s16
      %p164 = scmp.lt.s32.totalorder %s16, 3
      %p165 = pnand %p163, %p164
      %p166 = pneg %p165
      // Predicated region
      $region29: #{tpu_custom_call.1} parent=5 // pred_check
        _
      $region30: #{tpu_custom_call.1} parent=5 // pred_check_branch
        %168 = sbr.rel (%p165) target = $region32
      $region31: #{tpu_custom_call.1} parent=5 // pred_region
        %s169 = ssub.s32 %s16, 1
        %s170 = sand.u32 %s29, 1
        %s171 = scalar_lea.sflag [#allocation3], %s170
        %s172 = sand.u32 %s29, 1
        %s173 = smul.addr %s172, 8
        %s174 = scalar_lea.vmem [#allocation2], %s173
        // Predicated region
        $region33: #{tpu_custom_call.1} parent=31 // pred_check
          %p175 = pneg %p42
        $region34: #{tpu_custom_call.1} parent=31 // pred_check_branch
          %177 = sbr.rel (%p175) target = $region36
        $region35: #{tpu_custom_call.1} parent=31 // pred_region
          %179 = dma.done %s171, 128
        $region36: #{tpu_custom_call.1} parent=31 // pred_fallthru
          _
        // Predicated region
        $region37: #{tpu_custom_call.1} parent=31 // pred_check
          %p180 = pneg %p63
        $region38: #{tpu_custom_call.1} parent=31 // pred_check_branch
          %182 = sbr.rel (%p180) target = $region40
        $region39: #{tpu_custom_call.1} parent=31 // pred_region
          %184 = dma.done [#allocation6], 16
        $region40: #{tpu_custom_call.1} parent=31 // pred_fallthru
          _
        %s185 = sand.u32 %s29, 1
        %s186 = scalar_lea.sflag [#allocation3], %s185
        %s187 = sand.u32 %s29, 1
        %s188 = smul.addr %s187, 8
        %s189 = scalar_lea.vmem [#allocation2], %s188
        %p190 = pneg %p42
        %p191 = pneg %p39
        %p192 = pneg %p63
        %p193 = pneg %p60
        %p194 = pneg %p84
        %p195 = pneg %p81
        %p196 = pneg %p110
        %p197 = pneg %p107
        %s198 = sand.u32 %s97, 1
        %s199 = scalar_lea.sflag [#allocation4], %s198
        %s200 = sand.u32 %s97, 1
        %s201 = smul.addr %s200, 8
        %s202 = scalar_lea.vmem [#allocation7], %s201
        %v203 = vld [vmem:[%s174] sm:$0xff]
        %vm204 = vcmask 261120
        %v205 = vsel %vm204, %v203, 0.0
        %v206 = vrot.slane %v205, 4
        %v207 = vadd.f32 %v205, %v206
        %v208 = vrot.slane %v207, 2
        %v209 = vadd.f32 %v207, %v208
        %v210 = vrot.slane %v209, 1
        %v211 = vadd.f32 %v209, %v210
        %v212 = vrcp.pop 8.0
        %v213 = vmul.f32 8.0, %v212
        %v214 = vsub.f32 1.0, %v213
        %v215 = vmul.f32 %v212, %v214
        %v216 = vadd.f32 %v212, %v215
        %vm217 = vweird.f32 %v212
        %v218 = vsel %vm217, %v212, %v216
        %v219 = vmul.f32 %v211, %v218
        %v220 = vsub.f32 %v203, %v219
        %v221 = vmul.f32 %v220, %v220
        %v222 = vsel %vm204, %v221, 0.0
        %v223 = vrot.slane %v222, 4
        %v224 = vadd.f32 %v222, %v223
        %v225 = vrot.slane %v224, 2
        %v226 = vadd.f32 %v224, %v225
        %v227 = vrot.slane %v226, 1
        %v228 = vadd.f32 %v226, %v227
        %v229 = vmul.f32 %v228, %v218
        %v230 = vadd.f32 %v229, 1e-05
        %v231 = vrsqrt.pop %v230
        %v232 = vmul.f32 %v231, %v230
        %v233 = vmul.f32 %v232, %v231
        %v234 = vmul.f32 0.5, %v233
        %v235 = vsub.f32 1.5, %v234
        %v236 = vmul.f32 %v231, %v235
        %vm237 = vweird.f32 %v230
        %vm238 = vweird.f32 %v231
        %vm239 = vmor %vm237, %vm238
        %v240 = vsel %vm239, %v231, %v236
        %v241 = vld [vmem:[#allocation5] sm:$0x1]
        %v242 = vmul.f32 %v240, %v241
        %v243 = vld [vmem:[%s2] sm:$0x1]
        %v244 = vmul.f32 %v219, %v242
        %v245 = vsub.f32 %v243, %v244
        %v246 = vperm.slane %v242, 0
        %v247 = vmul.f32 %v203, %v246
        %v249 = vperm.slane %v245, 0
        %v251 = vadd.f32 %v247, %v249
        %252 = vst.msk [vmem:[%s202] sm:$0xff] %vm204, %v251
        %s253 = sand.u32 %s97, 1
        %s254 = scalar_lea.sflag [#allocation4], %s253
        %s255 = sand.u32 %s97, 1
        %s256 = smul.addr %s255, 8
        %s257 = scalar_lea.vmem [#allocation7], %s256
        // Predicated region
        $region41: #{tpu_custom_call.1} parent=31 // pred_check
          %p258 = pneg %p107
        $region42: #{tpu_custom_call.1} parent=31 // pred_check_branch
          %260 = sbr.rel (%p258) target = $region44
        $region43: #{tpu_custom_call.1} parent=31 // pred_region
          %262 = vsyncadd %s254, 0
          %s263 = smul.addr %s21, 8
          %s264 = scalar_lea.hbm %s3, %s263
          %s266 = sshll.u32 %s257, 4
          %s267 = int_to_ptr.vmem [resolvable:$true] %s266
          %s268 = sshll.u32 %s264, 4
          %s269 = int_to_ptr.hbm [resolvable:$true] %s268
          %271 = dma.vmem_to_hbm [thread:$0]  %s267, 128, %s269, %s254
        $region44: #{tpu_custom_call.1} parent=31 // pred_fallthru
          _
      $region32: #{tpu_custom_call.1} parent=5 // pred_fallthru
        _
      %p272 = scmp.le.s32.totalorder 2, %s16
      // Predicated region
      $region45: #{tpu_custom_call.1} parent=5 // pred_check
        %p273 = pneg %p272
      $region46: #{tpu_custom_call.1} parent=5 // pred_check_branch
        %275 = sbr.rel (%p273) target = $region48
      $region47: #{tpu_custom_call.1} parent=5 // pred_region
        %s276 = ssub.s32 %s16, 2
        // Predicated region
        $region49: #{tpu_custom_call.1} parent=47 // pred_check
          %p277 = pneg %p113
        $region50: #{tpu_custom_call.1} parent=47 // pred_check_branch
          %279 = sbr.rel (%p277) target = $region52
        $region51: #{tpu_custom_call.1} parent=47 // pred_region
          %s280 = sand.u32 %s98, 1
          %s281 = scalar_lea.sflag [#allocation4], %s280
          %s282 = sand.u32 %s98, 1
          %s283 = smul.addr %s282, 8
          %s284 = scalar_lea.vmem [#allocation7], %s283
          %286 = dma.done %s281, 128
        $region52: #{tpu_custom_call.1} parent=47 // pred_fallthru
          _
      $region48: #{tpu_custom_call.1} parent=5 // pred_fallthru
        _
    $region6: #{tpu_custom_call.1} parent=1 // loop_footer
      %s20 = sadd.s32 1, %s16
    $region7: #{tpu_custom_call.1} parent=1 // loop_footer_branch
      %15 = sbr.rel target = $region3
    $region8: #{tpu_custom_call.1} parent=1 // loop_exit
      _
    %287 = vsyncpa [#allocation3], 1
    %s288 = scalar_lea.sflag [#allocation3], 1
    %289 = vsyncpa %s288, 1
    %290 = vsyncpa [#allocation6], 1
    %291 = vsyncpa [#allocation4], 1
    %s292 = scalar_lea.sflag [#allocation4], 1
    %293 = vsyncpa %s292, 1

</llo_original>
